<compile_context>
chip_gen: v5e
topology: v5e:2x2
jax: 0.10.0
libtpu: 0.0.40
codegen_flags: <defaults>
</compile_context>

<pallas_src>
import math

import jax
import jax.numpy as jnp
from jax.experimental import pallas as pl
from jax.experimental.pallas import tpu as pltpu


# ----------------------------------------------------------------------------
# Torch layer shapes (in_features, out_features) — used only for init so the
# weight distribution matches nn.Linear (bound = 1/sqrt(in_features) for both
# weight and bias). forget_layer is never materialized (provably dead).
# ----------------------------------------------------------------------------
TORCH_LAYERS = {
    "cardTrans":     [(17, 17), (17, 8), (8, 1)],
    "actionTrans":   [(11, 11), (11, 5), (5, 1)],
    "card_decision": [(13, 3), (3, 3), (3, 3), (3, 3)],
    "fcC":           [(13, 6), (6, 3), (3, 5)],
    "hiddenCell":    [(3, 18), (18, 18)],
    "input_layer":   [(36, 36), (36, 18)],
    "output_layer":  [(36, 18), (18, 18)],
    "fc1":           [(21, 10), (10, 5), (5, 3)],
    "fc":            [(20, 10), (10, 5), (5, 5)],
}

# Packed per-hand input layout (lanes of the single (B, IN_COLS) input):
#   [  0:119)  7 card rows   x 17 features (row-major)
#   [119:185)  6 action rows x 11 features (row-major)
#   [192:207)  state x (15)
IN_COLS = 256
TOK_FEATS = 185
X_OFF = 192
X_DIM = 15

# ----------------------------------------------------------------------------
# Packed parameter slab: one (SLAB_ROWS, 256) f32 array.  Each fused weight
# (r, c) starts at an 8-aligned row offset; its (1, c) bias is packed into the
# first zero-padding row directly below it (row off + r).
# ----------------------------------------------------------------------------
SLAB_ENTRIES = [
    # token stage: 7x cardTrans + 6x actionTrans unrolled block-diagonally
    ("tok_w0",  (185, 185)),
    ("tok_w1",  (185, 86)),
    ("tok_w2",  (86, 13)),
    # card_decision.0 | fcC.0 on the shared (·, 13) token output
    ("cdfc_w0", (13, 9)),
    # card_decision.1 + fcC.1 block-diagonal
    ("cdfc_w1", (9, 6)),
    # card_decision.2 + fcC.2 block-diagonal (relu applied only to the cd half)
    ("cdfc_w2", (6, 8)),
    # card_decision.3 folded into hiddenCell.0: [cd3 | cd3 @ hc0]
    ("cdh_w",   (3, 21)),
    ("hc_w1",   (18, 18)),
    # input/output gate stacks fused (h_prev half is dead -> rows 18:36 only)
    ("gate_w0", (18, 54)),
    ("gate_w1", (54, 36)),
    # fc1 + fc stacks fused block-diagonally on [hidden | cD | x | cB]
    ("fcx_w0",  (41, 20)),
    ("fcx_w1",  (20, 10)),
    ("fcx_w2",  (10, 8)),
]

SLAB_COLS = 256


def _round_up(v, m):
    return ((v + m - 1) // m) * m


def _build_layout():
    layout = {}
    off = 0
    for name, (r, c) in SLAB_ENTRIES:
        layout[name] = (off, (r, c))
        off += _round_up(r + 1, 8)          # +1 row holds the bias
    return layout, off


LAYOUT, SLAB_ROWS = _build_layout()


# ----------------------------------------------------------------------------
# Pallas kernel: one batch tile (TB hands) of the whole qnn.forward.
#   in_ref   : (TB, 256)          packed [card | actions | x] per hand
#   slab_ref : (SLAB_ROWS, 256)   parameter slab, VMEM-resident across the grid
#   out_ref  : (TB, 8) = [x1 (3) | x2 (5)] per hand
# ----------------------------------------------------------------------------
def qnn_kernel(in_ref, slab_ref, out_ref):
    def Wt(name):
        off, (r, c) = LAYOUT[name]
        return slab_ref[off:off + r, 0:c]

    def Bi(name):
        off, (r, c) = LAYOUT[name]
        return slab_ref[off + r:off + r + 1, 0:c]

    relu = lambda z: jnp.maximum(z, 0.0)

    def dotp(a, w):
        return jnp.dot(a, w, preferred_element_type=jnp.float32)

    inp = in_ref[...]                                        # (TB, 256)
    tok = inp[:, 0:TOK_FEATS]                                # (TB, 185)
    xs = inp[:, X_OFF:X_OFF + X_DIM]                         # (TB, 15)

    # --- token stage: per-card / per-action MLPs as block-diagonal matmuls ---
    h = relu(dotp(tok, Wt("tok_w0")) + Bi("tok_w0"))         # (TB, 185)
    h = relu(dotp(h, Wt("tok_w1")) + Bi("tok_w1"))           # (TB, 86)
    xxx = dotp(h, Wt("tok_w2")) + Bi("tok_w2")               # (TB, 13) = [cardT|actT]

    # --- card_decision / fcC first two layers (fused) -------------------------
    h = relu(dotp(xxx, Wt("cdfc_w0")) + Bi("cdfc_w0"))       # (TB, 9)
    h = relu(dotp(h, Wt("cdfc_w1")) + Bi("cdfc_w1"))         # (TB, 6)
    t8 = dotp(h, Wt("cdfc_w2")) + Bi("cdfc_w2")              # (TB, 8)
    cd_h = relu(t8[:, 0:3])                                  # card_decision.2 (+relu)
    cB = t8[:, 3:8]                                          # fcC output (no relu)

    # --- card_decision.3 and hiddenCell.0 in one matmul -----------------------
    t21 = dotp(cd_h, Wt("cdh_w")) + Bi("cdh_w")              # (TB, 21) = [cD | pre-relu hc0]
    cD = t21[:, 0:3]
    cdH = dotp(relu(t21[:, 3:21]), Wt("hc_w1")) + Bi("hc_w1")  # (TB, 18)

    # --- input/output gates (fused); h_prev == 0, forget*0 dropped ------------
    g = relu(dotp(cdH, Wt("gate_w0")) + Bi("gate_w0"))       # (TB, 54)
    g = jax.nn.sigmoid(dotp(g, Wt("gate_w1")) + Bi("gate_w1"))  # (TB, 36)
    cell = g[:, 0:18] * cdH
    hidden = g[:, 18:36] * jnp.tanh(cell)                    # (TB, 18)

    # --- fused fc1 ([hidden|cD]) + fc ([x|cB]) stacks -> (TB, 8) = [x1 | x2] ---
    cat41 = jnp.concatenate([hidden, cD, xs, cB], axis=1)    # (TB, 41)
    h = relu(dotp(cat41, Wt("fcx_w0")) + Bi("fcx_w0"))       # (TB, 20)
    h = relu(dotp(h, Wt("fcx_w1")) + Bi("fcx_w1"))           # (TB, 10)
    out_ref[...] = dotp(h, Wt("fcx_w2")) + Bi("fcx_w2")      # (TB, 8)


# ----------------------------------------------------------------------------
# Host-side glue: init, fusion, slab packing, wrappers, pure-JAX reference.
# ----------------------------------------------------------------------------
def init_params(key):
    params = {}
    for mod, layers in TORCH_LAYERS.items():
        for i, (fan_in, fan_out) in enumerate(layers):
            key, kw, kb = jax.random.split(key, 3)
            bound = 1.0 / math.sqrt(fan_in)
            params[f"{mod}.{i}.w"] = jax.random.uniform(
                kw, (fan_in, fan_out), jnp.float32, -bound, bound)
            params[f"{mod}.{i}.b"] = jax.random.uniform(
                kb, (1, fan_out), jnp.float32, -bound, bound)
    return params


def _block_diag(*mats):
    rows = sum(m.shape[0] for m in mats)
    cols = sum(m.shape[1] for m in mats)
    out = jnp.zeros((rows, cols), jnp.float32)
    r = c = 0
    for m in mats:
        out = out.at[r:r + m.shape[0], c:c + m.shape[1]].set(m)
        r += m.shape[0]
        c += m.shape[1]
    return out


def build_slab(p):
    cat = lambda *xs: jnp.concatenate(xs, axis=1)

    def tok_layer(i):
        w = _block_diag(*([p[f"cardTrans.{i}.w"]] * 7 +
                          [p[f"actionTrans.{i}.w"]] * 6))
        b = cat(*([p[f"cardTrans.{i}.b"]] * 7 + [p[f"actionTrans.{i}.b"]] * 6))
        return w, b

    cd3_w, cd3_b = p["card_decision.3.w"], p["card_decision.3.b"]
    hc0_w, hc0_b = p["hiddenCell.0.w"], p["hiddenCell.0.b"]

    fused = {
        "tok_w0": tok_layer(0),
        "tok_w1": tok_layer(1),
        "tok_w2": tok_layer(2),
        "cdfc_w0": (cat(p["card_decision.0.w"], p["fcC.0.w"]),
                    cat(p["card_decision.0.b"], p["fcC.0.b"])),
        "cdfc_w1": (_block_diag(p["card_decision.1.w"], p["fcC.1.w"]),
                    cat(p["card_decision.1.b"], p["fcC.1.b"])),
        "cdfc_w2": (_block_diag(p["card_decision.2.w"], p["fcC.2.w"]),
                    cat(p["card_decision.2.b"], p["fcC.2.b"])),
        "cdh_w": (cat(cd3_w, cd3_w @ hc0_w),
                  cat(cd3_b, cd3_b @ hc0_w + hc0_b)),
        "hc_w1": (p["hiddenCell.1.w"], p["hiddenCell.1.b"]),
        # keep only the cdH half (rows 18:36) of the gate first-layer weights
        "gate_w0": (cat(p["input_layer.0.w"][18:36, :],
                        p["output_layer.0.w"][18:36, :]),
                    cat(p["input_layer.0.b"], p["output_layer.0.b"])),
        "gate_w1": (_block_diag(p["input_layer.1.w"], p["output_layer.1.w"]),
                    cat(p["input_layer.1.b"], p["output_layer.1.b"])),
        "fcx_w0": (_block_diag(p["fc1.0.w"], p["fc.0.w"]),
                   cat(p["fc1.0.b"], p["fc.0.b"])),
        "fcx_w1": (_block_diag(p["fc1.1.w"], p["fc.1.w"]),
                   cat(p["fc1.1.b"], p["fc.1.b"])),
        "fcx_w2": (_block_diag(p["fc1.2.w"], p["fc.2.w"]),
                   cat(p["fc1.2.b"], p["fc.2.b"])),
    }

    slab = jnp.zeros((SLAB_ROWS, SLAB_COLS), jnp.float32)
    for name, (off, (r, c)) in LAYOUT.items():
        w, b = fused[name]
        assert w.shape == (r, c), (name, w.shape, (r, c))
        assert b.shape == (1, c), (name, b.shape, (1, c))
        slab = slab.at[off:off + r, 0:c].set(w)
        slab = slab.at[off + r, 0:c].set(b[0])       # bias in the padding row
    return slab


def pack_inputs(xs, cards, actions):
    """xs: (B, 15), cards: (B, 7, 17), actions: (B, 6, 11) -> (B, 256)."""
    nb = cards.shape[0]
    inp = jnp.zeros((nb, IN_COLS), jnp.float32)
    inp = inp.at[:, 0:119].set(cards.reshape(nb, 119))
    inp = inp.at[:, 119:185].set(actions.reshape(nb, 66))
    inp = inp.at[:, X_OFF:X_OFF + X_DIM].set(xs.reshape(nb, X_DIM))
    return inp


def qnn_forward_batched(xs, cards, actions, slab, *, tb=128):
    """Batched rollout forward. Returns x1 (B, 3), x2 (B, 5)."""
    nb = cards.shape[0]
    tb = _round_up(max(8, min(tb, _round_up(nb, 8))), 8)
    nb_pad = _round_up(nb, tb)

    inp = pack_inputs(xs, cards, actions)
    if nb_pad != nb:
        inp = jnp.pad(inp, ((0, nb_pad - nb), (0, 0)))

    out = pl.pallas_call(
        qnn_kernel,
        out_shape=jax.ShapeDtypeStruct((nb_pad, 8), jnp.float32),
        grid_spec=pltpu.PrefetchScalarGridSpec(
            num_scalar_prefetch=0,
            grid=(nb_pad // tb,),
            in_specs=[
                pl.BlockSpec((tb, IN_COLS), lambda i: (i, 0)),
                # param slab: same block every step -> stays VMEM-resident
                pl.BlockSpec((SLAB_ROWS, SLAB_COLS), lambda i: (0, 0)),
            ],
            out_specs=pl.BlockSpec((tb, 8), lambda i: (i, 0)),
        ),
        compiler_params=pltpu.CompilerParams(
            dimension_semantics=("parallel",)),     # both TensorCores on v7x
    )(inp, slab)

    return out[:nb, 0:3], out[:nb, 3:8]


def qnn_forward(x, card, actions, slab):
    """Single-hand forward matching torch semantics: x1 (3,), x2 (1, 5), None."""
    x1, x2 = qnn_forward_batched(x.reshape(1, X_DIM), card[None], actions[None],
                                 slab, tb=8)
    return x1[0], x2[0:1], None


def qnn_reference(x, card, actions, p):
    """Pure-JAX reference of the (unfused) torch forward, for validation."""
    relu = lambda z: jnp.maximum(z, 0.0)
    sig = jax.nn.sigmoid

    def seq(mod, h, acts):
        for i, act in enumerate(acts):
            h = h @ p[f"{mod}.{i}.w"] + p[f"{mod}.{i}.b"]
            if act == "relu":
                h = relu(h)
            elif act == "sigmoid":
                h = sig(h)
        return h

    card_t = seq("cardTrans", card, ["relu", "relu", None])          # (7, 1)
    act_t = seq("actionTrans", actions, ["relu", "relu", None])      # (6, 1)
    xxx = jnp.concatenate([card_t.T, act_t.T], axis=1)               # (1, 13)
    cD = seq("card_decision", xxx, ["relu", "relu", "relu", None])   # (1, 3)
    cdH = seq("hiddenCell", cD, ["relu", None])                      # (1, 18)
    h_prev = jnp.zeros((1, 18), jnp.float32)
    xcat = jnp.concatenate([h_prev, cdH], axis=1)                    # (1, 36)
    input_gate = seq("input_layer", xcat, ["relu", "sigmoid"])
    output_gate = seq("output_layer", xcat, ["relu", "sigmoid"])
    cell = input_gate * cdH                      # forget_gate * zeros == 0
    hidden = output_gate * jnp.tanh(cell)
    out_cat = jnp.concatenate([hidden[0], cD[0]])[None, :]           # (1, 21)
    x1 = seq("fc1", out_cat, ["relu", "relu", None])[0]              # (3,)
    cB = seq("fcC", xxx, ["relu", "relu", None])                     # (1, 5)
    inp = jnp.concatenate([x, cB], axis=1)                           # (1, 20)
    x2 = seq("fc", inp, ["relu", "relu", None])                      # (1, 5)
    return x1, x2


if __name__ == "__main__":
    key = jax.random.PRNGKey(0)
    kp, kx, kc, ka = jax.random.split(key, 4)

    params = init_params(kp)
    slab = build_slab(params)

    B = 16                                     # hands per rollout batch (small demo)
    xs = jax.random.normal(kx, (B, 15), dtype=jnp.float32)        # state inputs
    cards = jax.random.normal(kc, (B, 7, 17), dtype=jnp.float32)  # 7 cards x 17
    actions = jax.random.normal(ka, (B, 6, 11), dtype=jnp.float32)  # 6 decisions x 11

    # batched kernel: tb=8 -> grid=(2,), slab resident across both steps
    x1b, x2b = qnn_forward_batched(xs, cards, actions, slab, tb=8)
    jax.block_until_ready((x1b, x2b))

    assert x1b.shape == (B, 3) and x2b.shape == (B, 5)
    assert bool(jnp.all(jnp.isfinite(x1b))) and bool(jnp.all(jnp.isfinite(x2b)))

    # validate every hand against the unfused pure-JAX forward
    for b in range(B):
        r1, r2 = qnn_reference(xs[b:b + 1], cards[b], actions[b], params)
        assert jnp.allclose(x1b[b], r1, rtol=1e-4, atol=1e-4), b
        assert jnp.allclose(x2b[b], r2[0], rtol=1e-4, atol=1e-4), b

    # single-hand wrapper keeps the original torch return shapes/semantics
    x1, x2, x3 = qnn_forward(xs[0:1], cards[0], actions[0], slab)
    jax.block_until_ready((x1, x2))
    assert x1.shape == (3,) and x2.shape == (1, 5) and x3 is None
    assert jnp.allclose(x1, x1b[0], rtol=1e-4, atol=1e-4)
    assert jnp.allclose(x2[0], x2b[0], rtol=1e-4, atol=1e-4)

    print("KERNEL_OK")
</pallas_src>

<mosaic_0001>
module attributes {stable_mosaic.version = 11 : i64} {
  func.func @qnn_kernel(%arg0: i32, %arg1: memref<8x256xf32, #tpu.memory_space<vmem>>, %arg2: memref<712x256xf32, #tpu.memory_space<vmem>>, %arg3: memref<8x8xf32, #tpu.memory_space<vmem>>) attributes {dimension_semantics = [#tpu.dimension_semantics<parallel>], iteration_bounds = array<i64: 2>, scalar_prefetch = 0 : i64, scratch_operands = 0 : i64, tpu.core_type = #tpu.core_type<tc>, window_params = [{transform_indices = @transform_0, window_bounds = array<i64: 8, 256>}, {pipeline_mode = #tpu.pipeline_mode<synchronous>, transform_indices = @transform_1, window_bounds = array<i64: 712, 256>}, {transform_indices = @transform_2, window_bounds = array<i64: 8, 8>}]} {
    %c0 = arith.constant 0 : index
    %c0_0 = arith.constant 0 : index
    %0 = vector.load %arg1[%c0, %c0_0] : memref<8x256xf32, #tpu.memory_space<vmem>>, vector<8x256xf32>
    %1 = vector.extract_strided_slice %0 {offsets = [0, 0], sizes = [8, 185], strides = [1, 1]} : vector<8x256xf32> to vector<8x185xf32>
    %2 = vector.extract_strided_slice %0 {offsets = [0, 192], sizes = [8, 15], strides = [1, 1]} : vector<8x256xf32> to vector<8x15xf32>
    %c0_1 = arith.constant 0 : index
    %c0_2 = arith.constant 0 : index
    %3 = vector.load %arg2[%c0_1, %c0_2] : memref<712x256xf32, #tpu.memory_space<vmem>>, vector<185x185xf32>
    %cst = arith.constant dense<0.000000e+00> : vector<8x185xf32>
    %4 = tpu.matmul %1, %3, %cst {dimension_numbers = #tpu.dot_dimension_numbers<[1], [0], [0], [1], [0, 0, 1, 1], [], []>} : vector<8x185xf32>, vector<185x185xf32>, vector<8x185xf32> -> vector<8x185xf32>
    %c185 = arith.constant 185 : index
    %c0_3 = arith.constant 0 : index
    %5 = vector.load %arg2[%c185, %c0_3] : memref<712x256xf32, #tpu.memory_space<vmem>>, vector<1x185xf32>
    %6 = vector.broadcast %5 : vector<1x185xf32> to vector<8x185xf32>
    %7 = arith.addf %4, %6 : vector<8x185xf32>
    %cst_4 = arith.constant 0.000000e+00 : f32
    %8 = vector.broadcast %cst_4 : f32 to vector<8x185xf32>
    %9 = arith.maximumf %7, %8 : vector<8x185xf32>
    %c192 = arith.constant 192 : index
    %c0_5 = arith.constant 0 : index
    %10 = vector.load %arg2[%c192, %c0_5] : memref<712x256xf32, #tpu.memory_space<vmem>>, vector<185x86xf32>
    %cst_6 = arith.constant dense<0.000000e+00> : vector<8x86xf32>
    %11 = tpu.matmul %9, %10, %cst_6 {dimension_numbers = #tpu.dot_dimension_numbers<[1], [0], [0], [1], [0, 0, 1, 1], [], []>} : vector<8x185xf32>, vector<185x86xf32>, vector<8x86xf32> -> vector<8x86xf32>
    %c377 = arith.constant 377 : index
    %c0_7 = arith.constant 0 : index
    %12 = vector.load %arg2[%c377, %c0_7] : memref<712x256xf32, #tpu.memory_space<vmem>>, vector<1x86xf32>
    %13 = vector.broadcast %12 : vector<1x86xf32> to vector<8x86xf32>
    %14 = arith.addf %11, %13 : vector<8x86xf32>
    %cst_8 = arith.constant 0.000000e+00 : f32
    %15 = vector.broadcast %cst_8 : f32 to vector<8x86xf32>
    %16 = arith.maximumf %14, %15 : vector<8x86xf32>
    %c384 = arith.constant 384 : index
    %c0_9 = arith.constant 0 : index
    %17 = vector.load %arg2[%c384, %c0_9] : memref<712x256xf32, #tpu.memory_space<vmem>>, vector<86x13xf32>
    %cst_10 = arith.constant dense<0.000000e+00> : vector<8x13xf32>
    %18 = tpu.matmul %16, %17, %cst_10 {dimension_numbers = #tpu.dot_dimension_numbers<[1], [0], [0], [1], [0, 0, 1, 1], [], []>} : vector<8x86xf32>, vector<86x13xf32>, vector<8x13xf32> -> vector<8x13xf32>
    %c470 = arith.constant 470 : index
    %c0_11 = arith.constant 0 : index
    %19 = vector.load %arg2[%c470, %c0_11] : memref<712x256xf32, #tpu.memory_space<vmem>>, vector<1x13xf32>
    %20 = vector.broadcast %19 : vector<1x13xf32> to vector<8x13xf32>
    %21 = arith.addf %18, %20 : vector<8x13xf32>
    %c472 = arith.constant 472 : index
    %c0_12 = arith.constant 0 : index
    %22 = vector.load %arg2[%c472, %c0_12] : memref<712x256xf32, #tpu.memory_space<vmem>>, vector<13x9xf32>
    %cst_13 = arith.constant dense<0.000000e+00> : vector<8x9xf32>
    %23 = tpu.matmul %21, %22, %cst_13 {dimension_numbers = #tpu.dot_dimension_numbers<[1], [0], [0], [1], [0, 0, 1, 1], [], []>} : vector<8x13xf32>, vector<13x9xf32>, vector<8x9xf32> -> vector<8x9xf32>
    %c485 = arith.constant 485 : index
    %c0_14 = arith.constant 0 : index
    %24 = vector.load %arg2[%c485, %c0_14] : memref<712x256xf32, #tpu.memory_space<vmem>>, vector<1x9xf32>
    %25 = vector.broadcast %24 : vector<1x9xf32> to vector<8x9xf32>
    %26 = arith.addf %23, %25 : vector<8x9xf32>
    %cst_15 = arith.constant 0.000000e+00 : f32
    %27 = vector.broadcast %cst_15 : f32 to vector<8x9xf32>
    %28 = arith.maximumf %26, %27 : vector<8x9xf32>
    %c488 = arith.constant 488 : index
    %c0_16 = arith.constant 0 : index
    %29 = vector.load %arg2[%c488, %c0_16] : memref<712x256xf32, #tpu.memory_space<vmem>>, vector<9x6xf32>
    %cst_17 = arith.constant dense<0.000000e+00> : vector<8x6xf32>
    %30 = tpu.matmul %28, %29, %cst_17 {dimension_numbers = #tpu.dot_dimension_numbers<[1], [0], [0], [1], [0, 0, 1, 1], [], []>} : vector<8x9xf32>, vector<9x6xf32>, vector<8x6xf32> -> vector<8x6xf32>
    %c497 = arith.constant 497 : index
    %c0_18 = arith.constant 0 : index
    %31 = vector.load %arg2[%c497, %c0_18] : memref<712x256xf32, #tpu.memory_space<vmem>>, vector<1x6xf32>
    %32 = vector.broadcast %31 : vector<1x6xf32> to vector<8x6xf32>
    %33 = arith.addf %30, %32 : vector<8x6xf32>
    %cst_19 = arith.constant 0.000000e+00 : f32
    %34 = vector.broadcast %cst_19 : f32 to vector<8x6xf32>
    %35 = arith.maximumf %33, %34 : vector<8x6xf32>
    %c504 = arith.constant 504 : index
    %c0_20 = arith.constant 0 : index
    %36 = vector.load %arg2[%c504, %c0_20] : memref<712x256xf32, #tpu.memory_space<vmem>>, vector<6x8xf32>
    %cst_21 = arith.constant dense<0.000000e+00> : vector<8x8xf32>
    %37 = tpu.matmul %35, %36, %cst_21 {dimension_numbers = #tpu.dot_dimension_numbers<[1], [0], [0], [1], [0, 0, 1, 1], [], []>} : vector<8x6xf32>, vector<6x8xf32>, vector<8x8xf32> -> vector<8x8xf32>
    %c510 = arith.constant 510 : index
    %c0_22 = arith.constant 0 : index
    %38 = vector.load %arg2[%c510, %c0_22] : memref<712x256xf32, #tpu.memory_space<vmem>>, vector<1x8xf32>
    %39 = vector.broadcast %38 : vector<1x8xf32> to vector<8x8xf32>
    %40 = arith.addf %37, %39 : vector<8x8xf32>
    %41 = vector.extract_strided_slice %40 {offsets = [0, 0], sizes = [8, 3], strides = [1, 1]} : vector<8x8xf32> to vector<8x3xf32>
    %cst_23 = arith.constant 0.000000e+00 : f32
    %42 = vector.broadcast %cst_23 : f32 to vector<8x3xf32>
    %43 = arith.maximumf %41, %42 : vector<8x3xf32>
    %44 = vector.extract_strided_slice %40 {offsets = [0, 3], sizes = [8, 5], strides = [1, 1]} : vector<8x8xf32> to vector<8x5xf32>
    %c512 = arith.constant 512 : index
    %c0_24 = arith.constant 0 : index
    %45 = vector.load %arg2[%c512, %c0_24] : memref<712x256xf32, #tpu.memory_space<vmem>>, vector<3x21xf32>
    %cst_25 = arith.constant dense<0.000000e+00> : vector<8x21xf32>
    %46 = tpu.matmul %43, %45, %cst_25 {dimension_numbers = #tpu.dot_dimension_numbers<[1], [0], [0], [1], [0, 0, 1, 1], [], []>} : vector<8x3xf32>, vector<3x21xf32>, vector<8x21xf32> -> vector<8x21xf32>
    %c515 = arith.constant 515 : index
    %c0_26 = arith.constant 0 : index
    %47 = vector.load %arg2[%c515, %c0_26] : memref<712x256xf32, #tpu.memory_space<vmem>>, vector<1x21xf32>
    %48 = vector.broadcast %47 : vector<1x21xf32> to vector<8x21xf32>
    %49 = arith.addf %46, %48 : vector<8x21xf32>
    %50 = vector.extract_strided_slice %49 {offsets = [0, 0], sizes = [8, 3], strides = [1, 1]} : vector<8x21xf32> to vector<8x3xf32>
    %51 = vector.extract_strided_slice %49 {offsets = [0, 3], sizes = [8, 18], strides = [1, 1]} : vector<8x21xf32> to vector<8x18xf32>
    %cst_27 = arith.constant 0.000000e+00 : f32
    %52 = vector.broadcast %cst_27 : f32 to vector<8x18xf32>
    %53 = arith.maximumf %51, %52 : vector<8x18xf32>
    %c520 = arith.constant 520 : index
    %c0_28 = arith.constant 0 : index
    %54 = vector.load %arg2[%c520, %c0_28] : memref<712x256xf32, #tpu.memory_space<vmem>>, vector<18x18xf32>
    %cst_29 = arith.constant dense<0.000000e+00> : vector<8x18xf32>
    %55 = tpu.matmul %53, %54, %cst_29 {dimension_numbers = #tpu.dot_dimension_numbers<[1], [0], [0], [1], [0, 0, 1, 1], [], []>} : vector<8x18xf32>, vector<18x18xf32>, vector<8x18xf32> -> vector<8x18xf32>
    %c538 = arith.constant 538 : index
    %c0_30 = arith.constant 0 : index
    %56 = vector.load %arg2[%c538, %c0_30] : memref<712x256xf32, #tpu.memory_space<vmem>>, vector<1x18xf32>
    %57 = vector.broadcast %56 : vector<1x18xf32> to vector<8x18xf32>
    %58 = arith.addf %55, %57 : vector<8x18xf32>
    %c544 = arith.constant 544 : index
    %c0_31 = arith.constant 0 : index
    %59 = vector.load %arg2[%c544, %c0_31] : memref<712x256xf32, #tpu.memory_space<vmem>>, vector<18x54xf32>
    %cst_32 = arith.constant dense<0.000000e+00> : vector<8x54xf32>
    %60 = tpu.matmul %58, %59, %cst_32 {dimension_numbers = #tpu.dot_dimension_numbers<[1], [0], [0], [1], [0, 0, 1, 1], [], []>} : vector<8x18xf32>, vector<18x54xf32>, vector<8x54xf32> -> vector<8x54xf32>
    %c562 = arith.constant 562 : index
    %c0_33 = arith.constant 0 : index
    %61 = vector.load %arg2[%c562, %c0_33] : memref<712x256xf32, #tpu.memory_space<vmem>>, vector<1x54xf32>
    %62 = vector.broadcast %61 : vector<1x54xf32> to vector<8x54xf32>
    %63 = arith.addf %60, %62 : vector<8x54xf32>
    %cst_34 = arith.constant 0.000000e+00 : f32
    %64 = vector.broadcast %cst_34 : f32 to vector<8x54xf32>
    %65 = arith.maximumf %63, %64 : vector<8x54xf32>
    %c568 = arith.constant 568 : index
    %c0_35 = arith.constant 0 : index
    %66 = vector.load %arg2[%c568, %c0_35] : memref<712x256xf32, #tpu.memory_space<vmem>>, vector<54x36xf32>
    %cst_36 = arith.constant dense<0.000000e+00> : vector<8x36xf32>
    %67 = tpu.matmul %65, %66, %cst_36 {dimension_numbers = #tpu.dot_dimension_numbers<[1], [0], [0], [1], [0, 0, 1, 1], [], []>} : vector<8x54xf32>, vector<54x36xf32>, vector<8x36xf32> -> vector<8x36xf32>
    %c622 = arith.constant 622 : index
    %c0_37 = arith.constant 0 : index
    %68 = vector.load %arg2[%c622, %c0_37] : memref<712x256xf32, #tpu.memory_space<vmem>>, vector<1x36xf32>
    %69 = vector.broadcast %68 : vector<1x36xf32> to vector<8x36xf32>
    %70 = arith.addf %67, %69 : vector<8x36xf32>
    %71 = arith.negf %70 : vector<8x36xf32>
    %72 = math.exp %71 : vector<8x36xf32>
    %cst_38 = arith.constant 1.000000e+00 : f32
    %73 = vector.broadcast %cst_38 : f32 to vector<8x36xf32>
    %74 = arith.addf %73, %72 : vector<8x36xf32>
    %75 = arith.divf %73, %74 : vector<8x36xf32>
    %76 = vector.extract_strided_slice %75 {offsets = [0, 0], sizes = [8, 18], strides = [1, 1]} : vector<8x36xf32> to vector<8x18xf32>
    %77 = arith.mulf %76, %58 : vector<8x18xf32>
    %78 = vector.extract_strided_slice %75 {offsets = [0, 18], sizes = [8, 18], strides = [1, 1]} : vector<8x36xf32> to vector<8x18xf32>
    %79 = math.tanh %77 : vector<8x18xf32>
    %80 = arith.mulf %78, %79 : vector<8x18xf32>
    %81 = tpu.concatenate %80, %50, %2, %44 in 1 : vector<8x18xf32>, vector<8x3xf32>, vector<8x15xf32>, vector<8x5xf32> -> vector<8x41xf32>
    %c624 = arith.constant 624 : index
    %c0_39 = arith.constant 0 : index
    %82 = vector.load %arg2[%c624, %c0_39] : memref<712x256xf32, #tpu.memory_space<vmem>>, vector<41x20xf32>
    %cst_40 = arith.constant dense<0.000000e+00> : vector<8x20xf32>
    %83 = tpu.matmul %81, %82, %cst_40 {dimension_numbers = #tpu.dot_dimension_numbers<[1], [0], [0], [1], [0, 0, 1, 1], [], []>} : vector<8x41xf32>, vector<41x20xf32>, vector<8x20xf32> -> vector<8x20xf32>
    %c665 = arith.constant 665 : index
    %c0_41 = arith.constant 0 : index
    %84 = vector.load %arg2[%c665, %c0_41] : memref<712x256xf32, #tpu.memory_space<vmem>>, vector<1x20xf32>
    %85 = vector.broadcast %84 : vector<1x20xf32> to vector<8x20xf32>
    %86 = arith.addf %83, %85 : vector<8x20xf32>
    %cst_42 = arith.constant 0.000000e+00 : f32
    %87 = vector.broadcast %cst_42 : f32 to vector<8x20xf32>
    %88 = arith.maximumf %86, %87 : vector<8x20xf32>
    %c672 = arith.constant 672 : index
    %c0_43 = arith.constant 0 : index
    %89 = vector.load %arg2[%c672, %c0_43] : memref<712x256xf32, #tpu.memory_space<vmem>>, vector<20x10xf32>
    %cst_44 = arith.constant dense<0.000000e+00> : vector<8x10xf32>
    %90 = tpu.matmul %88, %89, %cst_44 {dimension_numbers = #tpu.dot_dimension_numbers<[1], [0], [0], [1], [0, 0, 1, 1], [], []>} : vector<8x20xf32>, vector<20x10xf32>, vector<8x10xf32> -> vector<8x10xf32>
    %c692 = arith.constant 692 : index
    %c0_45 = arith.constant 0 : index
    %91 = vector.load %arg2[%c692, %c0_45] : memref<712x256xf32, #tpu.memory_space<vmem>>, vector<1x10xf32>
    %92 = vector.broadcast %91 : vector<1x10xf32> to vector<8x10xf32>
    %93 = arith.addf %90, %92 : vector<8x10xf32>
    %cst_46 = arith.constant 0.000000e+00 : f32
    %94 = vector.broadcast %cst_46 : f32 to vector<8x10xf32>
    %95 = arith.maximumf %93, %94 : vector<8x10xf32>
    %c696 = arith.constant 696 : index
    %c0_47 = arith.constant 0 : index
    %96 = vector.load %arg2[%c696, %c0_47] : memref<712x256xf32, #tpu.memory_space<vmem>>, vector<10x8xf32>
    %cst_48 = arith.constant dense<0.000000e+00> : vector<8x8xf32>
    %97 = tpu.matmul %95, %96, %cst_48 {dimension_numbers = #tpu.dot_dimension_numbers<[1], [0], [0], [1], [0, 0, 1, 1], [], []>} : vector<8x10xf32>, vector<10x8xf32>, vector<8x8xf32> -> vector<8x8xf32>
    %c706 = arith.constant 706 : index
    %c0_49 = arith.constant 0 : index
    %98 = vector.load %arg2[%c706, %c0_49] : memref<712x256xf32, #tpu.memory_space<vmem>>, vector<1x8xf32>
    %99 = vector.broadcast %98 : vector<1x8xf32> to vector<8x8xf32>
    %100 = arith.addf %97, %99 : vector<8x8xf32>
    %c0_50 = arith.constant 0 : index
    %c0_51 = arith.constant 0 : index
    %101 = vector.load %arg3[%c0_50, %c0_51] : memref<8x8xf32, #tpu.memory_space<vmem>>, vector<8x8xf32>
    tpu.vector_store %arg3[%c0_50, %c0_51], %100 {strides = array<i32>} : memref<8x8xf32, #tpu.memory_space<vmem>>, vector<8x8xf32>,
    return
  }
  func.func @transform_0(%arg0: i32) -> (i32, i32) {
    %c0_i32 = arith.constant 0 : i32
    %c0_i32_0 = arith.constant 0 : i32
    return %arg0, %c0_i32 : i32, i32
  }
  func.func @transform_1(%arg0: i32) -> (i32, i32) {
    %c0_i32 = arith.constant 0 : i32
    %c0_i32_0 = arith.constant 0 : i32
    %c0_i32_1 = arith.constant 0 : i32
    return %c0_i32, %c0_i32_0 : i32, i32
  }
  func.func @transform_2(%arg0: i32) -> (i32, i32) {
    %c0_i32 = arith.constant 0 : i32
    %c0_i32_0 = arith.constant 0 : i32
    return %arg0, %c0_i32 : i32, i32
  }
}

</mosaic_0001>

<llo_original>
// kernel: tpu_custom_call.1
$region0: #{tpu_custom_call.1}
  #allocation0 [shape = 'u32[]', space=smem, size = 0x4, offset = 0x4, fixed_abs, tag = 'smem constant byte address 0x4 - core index']
  #allocation1 [shape = 'u32[72,128]{1,0:T(1,128)}', space=vmem, size = 0x9000, scoped, tag = 'internal scratch']
  %s0 = inlined_call_operand.hbm [shape: f32[16,256], index: 0, kind: input, shape index: {}]
  %s1 = inlined_call_operand.hbm [shape: f32[712,256], index: 1, kind: input, shape index: {}]
  %s2 = inlined_call_operand.vmem [shape: f32[16,8], index: 2, kind: output, shape index: {}]
  %s3 = sld [smem:[#allocation0]]
  $region49: #{tpu_custom_call.1} parent=0
    _
  %s5 = ssub.s32 1, %s3
  %s6 = scalar_select 0, %s5, %s3
  $region1: #{tpu_custom_call.1} parent=0
    #allocation2 [shape = 'u8[16384]{0}', space=vmem, size = 0x4000, scoped, tag = 'input window, operand 0']
    #allocation3 [shape = 's32[2]{0}', space=sflag, size = 0x8, scoped, tag = 'scoped memory for tpu_custom_call.1']
    #allocation4 [shape = 'u8[729088]{0}', space=vmem, size = 0xb2000, scoped, tag = 'input window, operand 1, single buffered']
    #allocation5 [shape = 's32[1]{0}', space=sflag, size = 0x4, scoped, tag = 'scoped memory for tpu_custom_call.1']
    %7 = vsyncpa [#allocation3], 0
    %s8 = scalar_lea.sflag [#allocation3], 1
    %9 = vsyncpa %s8, 0
    %10 = vsyncpa [#allocation5], 0
    loop: start=0, step=1, limit=4
    $region2: #{tpu_custom_call.1} parent=1 // loop_pre_header
      _
    $region3: #{tpu_custom_call.1} parent=1 // loop_header
      %s12 = sphi 0, %s16
      %p13 = scmp.ge.s32.totalorder %s12, 4
      %s22 = sphi 0, %s24
      %s25 = sphi 0, %s22
      %s26 = sphi 0, %s25
      %s42 = sphi 0, %s26
      %s46 = sphi 0, %s46
      %s48 = sphi 0, %s46
      %s49 = sphi 0, %s48
      %s63 = sphi 0, %s49
      %s69 = sphi 0, %s71
      %s72 = sphi 0, %s69
      %s73 = sphi 0, %s72
      %s89 = sphi 0, %s73
    $region4: #{tpu_custom_call.1} parent=1 // loop_header_branch
      %15 = sbr.rel (%p13) target = $region8
    $region5: #{tpu_custom_call.1} parent=1 // loop_body
      %s17 = ssub.s32 %s12, 1
      %s18 = ssub.s32 %s12, 2
      %s19 = sadd.s32 %s12, 1
      %s20 = ssub.s32 %s12, %s19
      %p21 = scmp.eq.s32.totalorder %s20, 0
      %s23 = sadd.s32 %s22, 1
      %s24 = scalar_select %p21, %s22, %s23
      %p27 = pneg %p21
      %p28 = scmp.eq.s32.totalorder %s12, 1
      %p29 = por %p27, %p28
      %p30 = scmp.ne.s32.totalorder %s22, %s25
      %p31 = scmp.eq.s32.totalorder %s12, 0
      %p32 = por %p30, %p31
      %p33 = scmp.ne.s32.totalorder %s22, %s25
      %p34 = scmp.eq.s32.totalorder %s17, 1
      %p35 = por %p33, %p34
      %p36 = scmp.ne.s32.totalorder %s25, %s26
      %p37 = scmp.eq.s32.totalorder %s17, 0
      %p38 = por %p36, %p37
      %p39 = scmp.ne.s32.totalorder %s25, %s26
      %p40 = scmp.eq.s32.totalorder %s18, 1
      %p41 = por %p39, %p40
      %p43 = scmp.ne.s32.totalorder %s26, %s42
      %p44 = scmp.eq.s32.totalorder %s18, 0
      %p45 = por %p43, %p44
      %s47 = sadd.s32 %s46, 1
      %p50 = scmp.eq.s32.totalorder %s12, 1
      %p51 = scmp.ne.s32.totalorder %s46, %s48
      %p52 = scmp.eq.s32.totalorder %s12, 0
      %p53 = por %p51, %p52
      %p54 = scmp.ne.s32.totalorder %s46, %s48
      %p55 = scmp.eq.s32.totalorder %s17, 1
      %p56 = por %p54, %p55
      %p57 = scmp.ne.s32.totalorder %s48, %s49
      %p58 = scmp.eq.s32.totalorder %s17, 0
      %p59 = por %p57, %p58
      %p60 = scmp.ne.s32.totalorder %s48, %s49
      %p61 = scmp.eq.s32.totalorder %s18, 1
      %p62 = por %p60, %p61
      %p64 = scmp.ne.s32.totalorder %s49, %s63
      %p65 = scmp.eq.s32.totalorder %s18, 0
      %p66 = por %p64, %p65
      %s67 = ssub.s32 %s12, %s19
      %p68 = scmp.eq.s32.totalorder %s67, 0
      %s70 = sadd.s32 %s69, 1
      %s71 = scalar_select %p68, %s69, %s70
      %p74 = pneg %p68
      %p75 = scmp.eq.s32.totalorder %s12, 1
      %p76 = por %p74, %p75
      %p77 = scmp.ne.s32.totalorder %s69, %s72
      %p78 = scmp.eq.s32.totalorder %s12, 0
      %p79 = por %p77, %p78
      %p80 = scmp.ne.s32.totalorder %s69, %s72
      %p81 = scmp.eq.s32.totalorder %s17, 1
      %p82 = por %p80, %p81
      %p83 = scmp.ne.s32.totalorder %s72, %s73
      %p84 = scmp.eq.s32.totalorder %s17, 0
      %p85 = por %p83, %p84
      %p86 = scmp.ne.s32.totalorder %s72, %s73
      %p87 = scmp.eq.s32.totalorder %s18, 1
      %p88 = por %p86, %p87
      %p90 = scmp.ne.s32.totalorder %s73, %s89
      %p91 = scmp.eq.s32.totalorder %s18, 0
      %p92 = por %p90, %p91
      %p93 = scmp.le.s32.totalorder 1, %s12
      %p94 = scmp.lt.s32.totalorder %s12, 3
      %p95 = pnand %p93, %p94
      %p96 = pneg %p95
      // Predicated region
      $region9: #{tpu_custom_call.1} parent=5 // pred_check
        _
      $region10: #{tpu_custom_call.1} parent=5 // pred_check_branch
        %98 = sbr.rel (%p95) target = $region12
      $region11: #{tpu_custom_call.1} parent=5 // pred_region
        %s99 = ssub.s32 %s12, 1
        // Predicated region
        $region13: #{tpu_custom_call.1} parent=11 // pred_check
          %p100 = pneg %p59
        $region14: #{tpu_custom_call.1} parent=11 // pred_check_branch
          %102 = sbr.rel (%p100) target = $region16
        $region15: #{tpu_custom_call.1} parent=11 // pred_region
          %104 = vsyncadd [#allocation5], 0
          %s105 = sshll.u32 %s1, 4
          %s106 = int_to_ptr.hbm [resolvable:$true] %s105
          %s107 = sshll.u32 [#allocation4], 4
          %s108 = int_to_ptr.vmem [resolvable:$true] %s107
          %113 = dma.hbm_to_vmem [thread:$0]  %s106, 22784, %s108, [#allocation5], 256, 256, 16
        $region16: #{tpu_custom_call.1} parent=11 // pred_fallthru
          _
      $region12: #{tpu_custom_call.1} parent=5 // pred_fallthru
        _
      %p114 = scmp.lt.s32.totalorder %s12, 2
      // Predicated region
      $region17: #{tpu_custom_call.1} parent=5 // pred_check
        %p115 = pneg %p114
      $region18: #{tpu_custom_call.1} parent=5 // pred_check_branch
        %117 = sbr.rel (%p115) target = $region20
      $region19: #{tpu_custom_call.1} parent=5 // pred_region
        // Predicated region
        $region21: #{tpu_custom_call.1} parent=19 // pred_check
          %p118 = pneg %p32
        $region22: #{tpu_custom_call.1} parent=19 // pred_check_branch
          %120 = sbr.rel (%p118) target = $region24
        $region23: #{tpu_custom_call.1} parent=19 // pred_region
          %s121 = sand.u32 %s22, 1
          %s122 = scalar_lea.sflag [#allocation3], %s121
          %s123 = sand.u32 %s22, 1
          %s124 = smul.addr %s123, 16
          %s125 = scalar_lea.vmem [#allocation2], %s124
          %127 = vsyncadd %s122, 0
          %s128 = smul.addr %s12, 2
          %s129 = smul.addr %s128, 8
          %s130 = scalar_lea.hbm %s0, %s129
          %s132 = sshll.u32 %s130, 4
          %s133 = int_to_ptr.hbm [resolvable:$true] %s132
          %s134 = sshll.u32 %s125, 4
          %s135 = int_to_ptr.vmem [resolvable:$true] %s134
          %137 = dma.hbm_to_vmem [thread:$0]  %s133, 256, %s135, %s122
        $region24: #{tpu_custom_call.1} parent=19 // pred_fallthru
          _
      $region20: #{tpu_custom_call.1} parent=5 // pred_fallthru
        _
      %p138 = scmp.le.s32.totalorder 1, %s12
      %p139 = scmp.lt.s32.totalorder %s12, 3
      %p140 = pnand %p138, %p139
      %p141 = pneg %p140
      // Predicated region
      $region25: #{tpu_custom_call.1} parent=5 // pred_check
        _
      $region26: #{tpu_custom_call.1} parent=5 // pred_check_branch
        %143 = sbr.rel (%p140) target = $region28
      $region27: #{tpu_custom_call.1} parent=5 // pred_region
        %s144 = ssub.s32 %s12, 1
        %s145 = sand.u32 %s25, 1
        %s146 = scalar_lea.sflag [#allocation3], %s145
        %s147 = sand.u32 %s25, 1
        %s148 = smul.addr %s147, 16
        %s149 = scalar_lea.vmem [#allocation2], %s148
        // Predicated region
        $region29: #{tpu_custom_call.1} parent=27 // pred_check
          %p150 = pneg %p38
        $region30: #{tpu_custom_call.1} parent=27 // pred_check_branch
          %152 = sbr.rel (%p150) target = $region32
        $region31: #{tpu_custom_call.1} parent=27 // pred_region
          %154 = dma.done %s146, 256
        $region32: #{tpu_custom_call.1} parent=27 // pred_fallthru
          _
        // Predicated region
        $region33: #{tpu_custom_call.1} parent=27 // pred_check
          %p155 = pneg %p59
        $region34: #{tpu_custom_call.1} parent=27 // pred_check_branch
          %157 = sbr.rel (%p155) target = $region36
        $region35: #{tpu_custom_call.1} parent=27 // pred_region
          %159 = dma.done [#allocation5], 22784
        $region36: #{tpu_custom_call.1} parent=27 // pred_fallthru
          _
        %s160 = sand.u32 %s25, 1
        %s161 = scalar_lea.sflag [#allocation3], %s160
        %s162 = sand.u32 %s25, 1
        %s163 = smul.addr %s162, 16
        %s164 = scalar_lea.vmem [#allocation2], %s163
        %p165 = pneg %p38
        %p166 = pneg %p35
        %p167 = pneg %p59
        %p168 = pneg %p56
        %p169 = pneg %p85
        %p170 = pneg %p82
        %p171 = scmp.lt.s32.totalorder %s17, 1
        %s172 = scalar_select %p171, %s17, 1
        %s173 = smul.addr %s172, 8
        %s174 = scalar_lea.vmem %s2, %s173
        %p175 = scmp.lt.s32.totalorder %s17, 1
        %s176 = scalar_select %p175, %s17, 1
        %s177 = smul.addr %s176, 8
        %s178 = scalar_lea.vmem %s2, %s177
        %v179 = vld [vmem:[%s149] sm:$0xff]
        %v180 = vld [vmem:[%s149 + $0x8] sm:$0xff]
        %v181 = vld [vmem:[#allocation4] sm:$0xff]
        %v182 = vld [vmem:[#allocation4 + $0x8] sm:$0xff]
        %v183 = vld [vmem:[#allocation4 + $0x10] sm:$0xff]
        %v184 = vld [vmem:[#allocation4 + $0x18] sm:$0xff]
        %v185 = vld [vmem:[#allocation4 + $0x20] sm:$0xff]
        %v186 = vld [vmem:[#allocation4 + $0x28] sm:$0xff]
        %v187 = vld [vmem:[#allocation4 + $0x30] sm:$0xff]
        %v188 = vld [vmem:[#allocation4 + $0x38] sm:$0xff]
        %v189 = vld [vmem:[#allocation4 + $0x40] sm:$0xff]
        %v190 = vld [vmem:[#allocation4 + $0x48] sm:$0xff]
        %v191 = vld [vmem:[#allocation4 + $0x50] sm:$0xff]
        %v192 = vld [vmem:[#allocation4 + $0x58] sm:$0xff]
        %v193 = vld [vmem:[#allocation4 + $0x60] sm:$0xff]
        %v194 = vld [vmem:[#allocation4 + $0x68] sm:$0xff]
        %v195 = vld [vmem:[#allocation4 + $0x70] sm:$0xff]
        %v196 = vld [vmem:[#allocation4 + $0x78] sm:$0xff]
        %v197 = vld [vmem:[#allocation4 + $0x80] sm:$0xff]
        %v198 = vld [vmem:[#allocation4 + $0x88] sm:$0xff]
        %v199 = vld [vmem:[#allocation4 + $0x90] sm:$0xff]
        %v200 = vld [vmem:[#allocation4 + $0x98] sm:$0xff]
        %v201 = vld [vmem:[#allocation4 + $0xa0] sm:$0xff]
        %v202 = vld [vmem:[#allocation4 + $0xa8] sm:$0xff]
        %v203 = vld [vmem:[#allocation4 + $0xb0] sm:$0xff]
        %v204 = vld [vmem:[#allocation4 + $0xb8] sm:$0xff]
        %v205 = vld [vmem:[#allocation4 + $0xc0] sm:$0xff]
        %v206 = vld [vmem:[#allocation4 + $0xc8] sm:$0xff]
        %v207 = vld [vmem:[#allocation4 + $0xd0] sm:$0xff]
        %v208 = vld [vmem:[#allocation4 + $0xd8] sm:$0xff]
        %v209 = vld [vmem:[#allocation4 + $0xe0] sm:$0xff]
        %v210 = vld [vmem:[#allocation4 + $0xe8] sm:$0xff]
        %v211 = vld [vmem:[#allocation4 + $0xf0] sm:$0xff]
        %v212 = vld [vmem:[#allocation4 + $0xf8] sm:$0xff]
        %v213 = vld [vmem:[#allocation4 + $0x100] sm:$0xff]
        %v214 = vld [vmem:[#allocation4 + $0x108] sm:$0xff]
        %v215 = vld [vmem:[#allocation4 + $0x110] sm:$0xff]
        %v216 = vld [vmem:[#allocation4 + $0x118] sm:$0xff]
        %v217 = vld [vmem:[#allocation4 + $0x120] sm:$0xff]
        %v218 = vld [vmem:[#allocation4 + $0x128] sm:$0xff]
        %v219 = vld [vmem:[#allocation4 + $0x130] sm:$0xff]
        %v220 = vld [vmem:[#allocation4 + $0x138] sm:$0xff]
        %v221 = vld [vmem:[#allocation4 + $0x140] sm:$0xff]
        %v222 = vld [vmem:[#allocation4 + $0x148] sm:$0xff]
        %v223 = vld [vmem:[#allocation4 + $0x150] sm:$0xff]
        %v224 = vld [vmem:[#allocation4 + $0x158] sm:$0xff]
        %v225 = vld [vmem:[#allocation4 + $0x160] sm:$0xff]
        %v226 = vld [vmem:[#allocation4 + $0x168] sm:$0xff]
        %v227 = vld [vmem:[#allocation4 + $0x170] sm:$0x1]
        %v228 = vld [vmem:[#allocation4 + $0x178] sm:$0x1]
        %s229 = scalar_lea.vmem [#allocation4], 369
        %v230 = vld [vmem:[%s229] ss:$8 sm:$0x3]
        %v232 = vperm.slane %v230, 0
        %v233 = vperm.slane %v230, 1
        %vm236 = vcmask 465920
        %v238 = vsel %vm236, %v180, 0
        %vm240 = vcmask 1040384
        %v242 = vsel %vm240, %v227, 0
        %v245 = vsel %vm240, %v228, 0
        %247 = vmatpush.msra.mxu0 %v211
        %248 = vmatpush.msra.mxu0 %v209
        %249 = vmatpush.msra.mxu0 %v207
        %250 = vmatpush.msra.mxu0 %v205
        %251 = vmatpush.msra.mxu0 %v203
        %252 = vmatpush.msra.mxu0 %v201
        %253 = vmatpush.msra.mxu0 %v199
        %254 = vmatpush.msra.mxu0 %v197
        %255 = vmatpush.msra.mxu0 %v195
        %256 = vmatpush.msra.mxu0 %v193
        %257 = vmatpush.msra.mxu0 %v191
        %258 = vmatpush.msra.mxu0 %v189
        %259 = vmatpush.msra.mxu0 %v187
        %260 = vmatpush.msra.mxu0 %v185
        %261 = vmatpush.msra.mxu0 %v183
        %262 = vmatpush.msra.mxu0 %v181
        %263 = vmatmul.f32.gmra.mxu0 %v179
        %v264 = vpop.f32.mrf.mxu0
        %v265 = vadd.f32 %v232, %v264
        %266 = vdwg.mxu0
        %267 = vmatpush.msra.mxu0 0.0
        %268 = vmatpush.msra.mxu0 0.0
        %269 = vmatpush.msra.mxu0 0.0
        %270 = vmatpush.msra.mxu0 0.0
        %271 = vmatpush.msra.mxu0 0.0
        %272 = vmatpush.msra.mxu0 0.0
        %273 = vmatpush.msra.mxu0 0.0
        %274 = vmatpush.msra.mxu0 0.0
        %275 = vmatpush.msra.mxu0 %v242
        %276 = vmatpush.msra.mxu0 %v225
        %277 = vmatpush.msra.mxu0 %v223
        %278 = vmatpush.msra.mxu0 %v221
        %279 = vmatpush.msra.mxu0 %v219
        %280 = vmatpush.msra.mxu0 %v217
        %281 = vmatpush.msra.mxu0 %v215
        %282 = vmatpush.msra.mxu0 %v213
        %283 = vmatmul.f32.gmra.mxu0 %v238
        %v284 = vpop.f32.mrf.mxu0
        %v285 = vadd.f32 %v265, %v284
        %286 = vdwg.mxu0
        %287 = vmatpush.msra.mxu0 %v212
        %288 = vmatpush.msra.mxu0 %v210
        %289 = vmatpush.msra.mxu0 %v208
        %290 = vmatpush.msra.mxu0 %v206
        %291 = vmatpush.msra.mxu0 %v204
        %292 = vmatpush.msra.mxu0 %v202
        %293 = vmatpush.msra.mxu0 %v200
        %294 = vmatpush.msra.mxu0 %v198
        %295 = vmatpush.msra.mxu0 %v196
        %296 = vmatpush.msra.mxu0 %v194
        %297 = vmatpush.msra.mxu0 %v192
        %298 = vmatpush.msra.mxu0 %v190
        %299 = vmatpush.msra.mxu0 %v188
        %300 = vmatpush.msra.mxu0 %v186
        %301 = vmatpush.msra.mxu0 %v184
        %302 = vmatpush.msra.mxu0 %v182
        %303 = vmatmul.f32.gmra.mxu0 %v179
        %v304 = vpop.f32.mrf.mxu0
        %v305 = vadd.f32 %v233, %v304
        %306 = vdwg.mxu0
        %307 = vmatpush.msra.mxu0 0.0
        %308 = vmatpush.msra.mxu0 0.0
        %309 = vmatpush.msra.mxu0 0.0
        %310 = vmatpush.msra.mxu0 0.0
        %311 = vmatpush.msra.mxu0 0.0
        %312 = vmatpush.msra.mxu0 0.0
        %313 = vmatpush.msra.mxu0 0.0
        %314 = vmatpush.msra.mxu0 0.0
        %315 = vmatpush.msra.mxu0 %v245
        %316 = vmatpush.msra.mxu0 %v226
        %317 = vmatpush.msra.mxu0 %v224
        %318 = vmatpush.msra.mxu0 %v222
        %319 = vmatpush.msra.mxu0 %v220
        %320 = vmatpush.msra.mxu0 %v218
        %321 = vmatpush.msra.mxu0 %v216
        %322 = vmatpush.msra.mxu0 %v214
        %323 = vmatmul.f32.gmra.mxu0 %v238
        %v324 = vpop.f32.mrf.mxu0
        %v325 = vadd.f32 %v305, %v324
        %326 = vdwg.mxu0
        %v327 = vmax.f32 %v285, 0.0
        %v328 = vmax.f32 %v325, 0.0
        %v329 = vld [vmem:[#allocation4 + $0x180] sm:$0xff]
        %v330 = vld [vmem:[#allocation4 + $0x190] sm:$0xff]
        %v331 = vld [vmem:[#allocation4 + $0x1a0] sm:$0xff]
        %v332 = vld [vmem:[#allocation4 + $0x1b0] sm:$0xff]
        %v333 = vld [vmem:[#allocation4 + $0x1c0] sm:$0xff]
        %v334 = vld [vmem:[#allocation4 + $0x1d0] sm:$0xff]
        %v335 = vld [vmem:[#allocation4 + $0x1e0] sm:$0xff]
        %v336 = vld [vmem:[#allocation4 + $0x1f0] sm:$0xff]
        %v337 = vld [vmem:[#allocation4 + $0x200] sm:$0xff]
        %v338 = vld [vmem:[#allocation4 + $0x210] sm:$0xff]
        %v339 = vld [vmem:[#allocation4 + $0x220] sm:$0xff]
        %v340 = vld [vmem:[#allocation4 + $0x230] sm:$0xff]
        %v341 = vld [vmem:[#allocation4 + $0x240] sm:$0xff]
        %v342 = vld [vmem:[#allocation4 + $0x250] sm:$0xff]
        %v343 = vld [vmem:[#allocation4 + $0x260] sm:$0xff]
        %v344 = vld [vmem:[#allocation4 + $0x270] sm:$0xff]
        %v345 = vld [vmem:[#allocation4 + $0x280] sm:$0xff]
        %v346 = vld [vmem:[#allocation4 + $0x290] sm:$0xff]
        %v347 = vld [vmem:[#allocation4 + $0x2a0] sm:$0xff]
        %v348 = vld [vmem:[#allocation4 + $0x2b0] sm:$0xff]
        %v349 = vld [vmem:[#allocation4 + $0x2c0] sm:$0xff]
        %v350 = vld [vmem:[#allocation4 + $0x2d0] sm:$0xff]
        %v351 = vld [vmem:[#allocation4 + $0x2e0] sm:$0xff]
        %v352 = vld [vmem:[#allocation4 + $0x2f0] sm:$0x1]
        %v353 = vld [vmem:[#allocation4 + $0x2f1] ss:$0 sm:$0xff]
        %v355 = vsel %vm236, %v328, 0
        %v358 = vsel %vm240, %v352, 0
        %360 = vmatpush.msra.mxu0 %v344
        %361 = vmatpush.msra.mxu0 %v343
        %362 = vmatpush.msra.mxu0 %v342
        %363 = vmatpush.msra.mxu0 %v341
        %364 = vmatpush.msra.mxu0 %v340
        %365 = vmatpush.msra.mxu0 %v339
        %366 = vmatpush.msra.mxu0 %v338
        %367 = vmatpush.msra.mxu0 %v337
        %368 = vmatpush.msra.mxu0 %v336
        %369 = vmatpush.msra.mxu0 %v335
        %370 = vmatpush.msra.mxu0 %v334
        %371 = vmatpush.msra.mxu0 %v333
        %372 = vmatpush.msra.mxu0 %v332
        %373 = vmatpush.msra.mxu0 %v331
        %374 = vmatpush.msra.mxu0 %v330
        %375 = vmatpush.msra.mxu0 %v329
        %376 = vmatmul.f32.gmra.mxu0 %v327
        %v377 = vpop.f32.mrf.mxu0
        %v378 = vadd.f32 %v353, %v377
        %379 = vdwg.mxu0
        %380 = vmatpush.msra.mxu0 0.0
        %381 = vmatpush.msra.mxu0 0.0
        %382 = vmatpush.msra.mxu0 0.0
        %383 = vmatpush.msra.mxu0 0.0
        %384 = vmatpush.msra.mxu0 0.0
        %385 = vmatpush.msra.mxu0 0.0
        %386 = vmatpush.msra.mxu0 0.0
        %387 = vmatpush.msra.mxu0 0.0
        %388 = vmatpush.msra.mxu0 %v358
        %389 = vmatpush.msra.mxu0 %v351
        %390 = vmatpush.msra.mxu0 %v350
        %391 = vmatpush.msra.mxu0 %v349
        %392 = vmatpush.msra.mxu0 %v348
        %393 = vmatpush.msra.mxu0 %v347
        %394 = vmatpush.msra.mxu0 %v346
        %395 = vmatpush.msra.mxu0 %v345
        %396 = vmatmul.f32.gmra.mxu0 %v355
        %v397 = vpop.f32.mrf.mxu0
        %v398 = vadd.f32 %v378, %v397
        %399 = vdwg.mxu0
        %v400 = vmax.f32 %v398, 0.0
        %v401 = vld [vmem:[#allocation4 + $0x300] sm:$0xff]
        %v402 = vld [vmem:[#allocation4 + $0x310] sm:$0xff]
        %v403 = vld [vmem:[#allocation4 + $0x320] sm:$0xff]
        %v404 = vld [vmem:[#allocation4 + $0x330] sm:$0xff]
        %v405 = vld [vmem:[#allocation4 + $0x340] sm:$0xff]
        %v406 = vld [vmem:[#allocation4 + $0x350] sm:$0xff]
        %v407 = vld [vmem:[#allocation4 + $0x360] sm:$0xff]
        %v408 = vld [vmem:[#allocation4 + $0x370] sm:$0xff]
        %v409 = vld [vmem:[#allocation4 + $0x380] sm:$0xff]
        %v410 = vld [vmem:[#allocation4 + $0x390] sm:$0xff]
        %v411 = vld [vmem:[#allocation4 + $0x3a0] sm:$0x3f]
        %v412 = vld [vmem:[#allocation4 + $0x3a6] ss:$0 sm:$0xff]
        %vm413 = vcmask 703488
        %v415 = vsel %vm413, %v400, 0
        %vm417 = vcmask 1045504
        %v419 = vsel %vm417, %v411, 0
        %421 = vmatpush.msra.mxu0 0.0
        %422 = vmatpush.msra.mxu0 0.0
        %423 = vmatpush.msra.mxu0 0.0
        %424 = vmatpush.msra.mxu0 0.0
        %425 = vmatpush.msra.mxu0 0.0
        %426 = vmatpush.msra.mxu0 %v419
        %427 = vmatpush.msra.mxu0 %v410
        %428 = vmatpush.msra.mxu0 %v409
        %429 = vmatpush.msra.mxu0 %v408
        %430 = vmatpush.msra.mxu0 %v407
        %431 = vmatpush.msra.mxu0 %v406
        %432 = vmatpush.msra.mxu0 %v405
        %433 = vmatpush.msra.mxu0 %v404
        %434 = vmatpush.msra.mxu0 %v403
        %435 = vmatpush.msra.mxu0 %v402
        %436 = vmatpush.msra.mxu0 %v401
        %437 = vmatmul.f32.gmra.mxu0 %v415
        %v438 = vpop.f32.mrf.mxu0
        %v439 = vadd.f32 %v412, %v438
        %440 = vdwg.mxu0
        %v441 = vld [vmem:[#allocation4 + $0x3b0] sm:$0xff]
        %v442 = vld [vmem:[#allocation4 + $0x3c0] sm:$0x1f]
        %v443 = vld [vmem:[#allocation4 + $0x3c5] ss:$0 sm:$0xff]
        %vm444 = vcmask 105472
        %v446 = vsel %vm444, %v439, 0
        %vm448 = vcmask 1044480
        %v450 = vsel %vm448, %v442, 0
        %452 = vmatpush.msra.mxu0 0.0
        %453 = vmatpush.msra.mxu0 0.0
        %454 = vmatpush.msra.mxu0 0.0
        %455 = vmatpush.msra.mxu0 0.0
        %456 = vmatpush.msra.mxu0 0.0
        %457 = vmatpush.msra.mxu0 0.0
        %458 = vmatpush.msra.mxu0 0.0
        %459 = vmatpush.msra.mxu0 0.0
        %460 = vmatpush.msra.mxu0 0.0
        %461 = vmatpush.msra.mxu0 0.0
        %462 = vmatpush.msra.mxu0 0.0
        %463 = vmatpush.msra.mxu0 0.0
        %464 = vmatpush.msra.mxu0 0.0
        %465 = vmatpush.msra.mxu0 0.0
        %466 = vmatpush.msra.mxu0 %v450
        %467 = vmatpush.msra.mxu0 %v441
        %468 = vmatmul.f32.gmra.mxu0 %v446
        %v469 = vpop.f32.mrf.mxu0
        %v470 = vadd.f32 %v443, %v469
        %471 = vdwg.mxu0
        %v472 = vmax.f32 %v470, 0.0
        %v473 = vld [vmem:[#allocation4 + $0x3d0] sm:$0xff]
        %v474 = vld [vmem:[#allocation4 + $0x3e0] sm:$0x1]
        %v475 = vld [vmem:[#allocation4 + $0x3e1] ss:$0 sm:$0xff]
        %vm476 = vcmask 72704
        %v478 = vsel %vm476, %v472, 0
        %v481 = vsel %vm240, %v474, 0
        %483 = vmatpush.msra.mxu0 0.0
        %484 = vmatpush.msra.mxu0 0.0
        %485 = vmatpush.msra.mxu0 0.0
        %486 = vmatpush.msra.mxu0 0.0
        %487 = vmatpush.msra.mxu0 0.0
        %488 = vmatpush.msra.mxu0 0.0
        %489 = vmatpush.msra.mxu0 0.0
        %490 = vmatpush.msra.mxu0 0.0
        %491 = vmatpush.msra.mxu0 0.0
        %492 = vmatpush.msra.mxu0 0.0
        %493 = vmatpush.msra.mxu0 0.0
        %494 = vmatpush.msra.mxu0 0.0
        %495 = vmatpush.msra.mxu0 0.0
        %496 = vmatpush.msra.mxu0 0.0
        %497 = vmatpush.msra.mxu0 %v481
        %498 = vmatpush.msra.mxu0 %v473
        %499 = vmatmul.f32.gmra.mxu0 %v478
        %v500 = vpop.f32.mrf.mxu0
        %v501 = vadd.f32 %v475, %v500
        %502 = vdwg.mxu0
        %v503 = vmax.f32 %v501, 0.0
        %v504 = vld [vmem:[#allocation4 + $0x3f0] sm:$0x3f]
        %v505 = vld [vmem:[#allocation4 + $0x3f6] ss:$0 sm:$0xff]
        %vm506 = vcmask 48128
        %v508 = vsel %vm506, %v503, 0
        %v511 = vsel %vm417, %v504, 0
        %513 = vmatpush.msra.mxu0 0.0
        %514 = vmatpush.msra.mxu0 0.0
        %515 = vmatpush.msra.mxu0 0.0
        %516 = vmatpush.msra.mxu0 0.0
        %517 = vmatpush.msra.mxu0 0.0
        %518 = vmatpush.msra.mxu0 0.0
        %519 = vmatpush.msra.mxu0 0.0
        %520 = vmatpush.msra.mxu0 0.0
        %521 = vmatpush.msra.mxu0 0.0
        %522 = vmatpush.msra.mxu0 0.0
        %523 = vmatpush.msra.mxu0 0.0
        %524 = vmatpush.msra.mxu0 0.0
        %525 = vmatpush.msra.mxu0 0.0
        %526 = vmatpush.msra.mxu0 0.0
        %527 = vmatpush.msra.mxu0 0.0
        %528 = vmatpush.msra.mxu0 %v511
        %529 = vmatmul.f32.gmra.mxu0 %v508
        %v530 = vpop.f32.mrf.mxu0
        %v531 = vadd.f32 %v505, %v530
        %532 = vdwg.mxu0
        %v533 = vmax.f32 %v531, 0.0
        %v534 = vld [vmem:[#allocation4 + $0x400] sm:$0x7]
        %v535 = vld [vmem:[#allocation4 + $0x403] ss:$0 sm:$0xff]
        %vm536 = vcmask 23552
        %v538 = vsel %vm536, %v533, 0
        %vm540 = vcmask 1042432
        %v542 = vsel %vm540, %v534, 0
        %544 = vmatpush.msra.mxu0 0.0
        %545 = vmatpush.msra.mxu0 0.0
        %546 = vmatpush.msra.mxu0 0.0
        %547 = vmatpush.msra.mxu0 0.0
        %548 = vmatpush.msra.mxu0 0.0
        %549 = vmatpush.msra.mxu0 0.0
        %550 = vmatpush.msra.mxu0 0.0
        %551 = vmatpush.msra.mxu0 0.0
        %552 = vmatpush.msra.mxu0 0.0
        %553 = vmatpush.msra.mxu0 0.0
        %554 = vmatpush.msra.mxu0 0.0
        %555 = vmatpush.msra.mxu0 0.0
        %556 = vmatpush.msra.mxu0 0.0
        %557 = vmatpush.msra.mxu0 0.0
        %558 = vmatpush.msra.mxu0 0.0
        %559 = vmatpush.msra.mxu0 %v542
        %560 = vmatmul.f32.gmra.mxu0 %v538
        %v561 = vpop.f32.mrf.mxu0
        %v562 = vadd.f32 %v535, %v561
        %563 = vdwg.mxu0
        %v564 = vmax.f32 %v562, 0.0
        %v565 = vld [vmem:[#allocation4 + $0x410] sm:$0xff]
        %v566 = vld [vmem:[#allocation4 + $0x420] sm:$0xff]
        %v567 = vld [vmem:[#allocation4 + $0x430] sm:$0x3]
        %v568 = vld [vmem:[#allocation4 + $0x432] ss:$0 sm:$0xff]
        %570 = vrot.lane.b32.xlu0 %v564, 125
        %v571 = vpop.permute.xlu0 %570
        %vm572 = vcmask 146432
        %v573 = vsel %vm572, %v571, 0
        %vm575 = vcmask 1041408
        %v577 = vsel %vm575, %v567, 0
        %579 = vmatpush.msra.mxu0 0.0
        %580 = vmatpush.msra.mxu0 0.0
        %581 = vmatpush.msra.mxu0 0.0
        %582 = vmatpush.msra.mxu0 0.0
        %583 = vmatpush.msra.mxu0 0.0
        %584 = vmatpush.msra.mxu0 0.0
        %585 = vmatpush.msra.mxu0 0.0
        %586 = vmatpush.msra.mxu0 0.0
        %587 = vmatpush.msra.mxu0 0.0
        %588 = vmatpush.msra.mxu0 0.0
        %589 = vmatpush.msra.mxu0 0.0
        %590 = vmatpush.msra.mxu0 0.0
        %591 = vmatpush.msra.mxu0 0.0
        %592 = vmatpush.msra.mxu0 %v577
        %593 = vmatpush.msra.mxu0 %v566
        %594 = vmatpush.msra.mxu0 %v565
        %595 = vmatmul.f32.gmra.mxu0 %v573
        %v596 = vpop.f32.mrf.mxu0
        %v597 = vadd.f32 %v568, %v596
        %598 = vdwg.mxu0
        %v599 = vld [vmem:[#allocation4 + $0x440] sm:$0xff]
        %v600 = vld [vmem:[#allocation4 + $0x450] sm:$0xff]
        %v601 = vld [vmem:[#allocation4 + $0x460] sm:$0x3]
        %v602 = vld [vmem:[#allocation4 + $0x462] ss:$0 sm:$0xff]
        %v604 = vsel %vm572, %v597, 0
        %v607 = vsel %vm575, %v601, 0
        %609 = vmatpush.msra.mxu0 0.0
        %610 = vmatpush.msra.mxu0 0.0
        %611 = vmatpush.msra.mxu0 0.0
        %612 = vmatpush.msra.mxu0 0.0
        %613 = vmatpush.msra.mxu0 0.0
        %614 = vmatpush.msra.mxu0 0.0
        %615 = vmatpush.msra.mxu0 0.0
        %616 = vmatpush.msra.mxu0 0.0
        %617 = vmatpush.msra.mxu0 0.0
        %618 = vmatpush.msra.mxu0 0.0
        %619 = vmatpush.msra.mxu0 0.0
        %620 = vmatpush.msra.mxu0 0.0
        %621 = vmatpush.msra.mxu0 0.0
        %622 = vmatpush.msra.mxu0 %v607
        %623 = vmatpush.msra.mxu0 %v600
        %624 = vmatpush.msra.mxu0 %v599
        %625 = vmatmul.f32.gmra.mxu0 %v604
        %v626 = vpop.f32.mrf.mxu0
        %v627 = vadd.f32 %v602, %v626
        %628 = vdwg.mxu0
        %v629 = vmax.f32 %v627, 0.0
        %v630 = vld [vmem:[#allocation4 + $0x470] sm:$0xff]
        %v631 = vld [vmem:[#allocation4 + $0x480] sm:$0xff]
        %v632 = vld [vmem:[#allocation4 + $0x490] sm:$0xff]
        %v633 = vld [vmem:[#allocation4 + $0x4a0] sm:$0xff]
        %v634 = vld [vmem:[#allocation4 + $0x4b0] sm:$0xff]
        %v635 = vld [vmem:[#allocation4 + $0x4c0] sm:$0xff]
        %v636 = vld [vmem:[#allocation4 + $0x4d0] sm:$0x3f]
        %v637 = vld [vmem:[#allocation4 + $0x4d6] ss:$0 sm:$0xff]
        %vm638 = vcmask 441344
        %v640 = vsel %vm638, %v629, 0
        %v643 = vsel %vm417, %v636, 0
        %645 = vmatpush.msra.mxu0 0.0
        %646 = vmatpush.msra.mxu0 0.0
        %647 = vmatpush.msra.mxu0 0.0
        %648 = vmatpush.msra.mxu0 0.0
        %649 = vmatpush.msra.mxu0 0.0
        %650 = vmatpush.msra.mxu0 0.0
        %651 = vmatpush.msra.mxu0 0.0
        %652 = vmatpush.msra.mxu0 0.0
        %653 = vmatpush.msra.mxu0 0.0
        %654 = vmatpush.msra.mxu0 %v643
        %655 = vmatpush.msra.mxu0 %v635
        %656 = vmatpush.msra.mxu0 %v634
        %657 = vmatpush.msra.mxu0 %v633
        %658 = vmatpush.msra.mxu0 %v632
        %659 = vmatpush.msra.mxu0 %v631
        %660 = vmatpush.msra.mxu0 %v630
        %661 = vmatmul.f32.gmra.mxu0 %v640
        %v662 = vpop.f32.mrf.mxu0
        %v663 = vadd.f32 %v637, %v662
        %664 = vdwg.mxu0
        %v665 = vxor.u32 %v663, 2147483648
        %v666 = vmul.f32 %v665, 1.442695
        %v667 = vpow.pop %v666
        %v668 = vadd.f32 %v667, 1.0
        %v669 = vrcp.pop %v668
        %v670 = vmul.f32 %v668, %v669
        %v671 = vsub.f32 1.0, %v670
        %v672 = vmul.f32 %v669, %v671
        %v673 = vadd.f32 %v669, %v672
        %vm674 = vweird.f32 %v668
        %vm675 = vweird.f32 %v669
        %vm676 = vmor %vm674, %vm675
        %v677 = vsel %vm676, %v669, %v673
        %v678 = vand.u32 2147483647, %v668
        %vm679 = vcmp.eq.f32.partialorder %v678, 8.507059e+37
        %v680 = vand.u32 %v668, 2147483648
        %v681 = vor.u32 1.1754944e-38, %v680
        %v682 = vsel %vm679, %v681, %v677
        %v683 = vmul.f32 1.0, %v682
        %v684 = vmul.f32 %v683, %v597
        %v685 = vtanh.pop %v684
        %687 = vrot.lane.b32.xlu0 %v685, 18
        %v688 = vpop.permute.xlu0 %687
        %v690 = vmul.f32 %v683, %v688
        %692 = vrot.lane.b32.xlu0 %v690, 110
        %v693 = vpop.permute.xlu0 %692
        %696 = vrot.lane.b32.xlu0 %v562, 18
        %v697 = vpop.permute.xlu0 %696
        %699 = vrot.lane.b32.xlu0 %v180, 85
        %v700 = vpop.permute.xlu0 %699
        %703 = vrot.lane.b32.xlu0 %v531, 33
        %v704 = vpop.permute.xlu0 %703
        %v706 = vsel %vm572, %v693, %v697
        %vm707 = vcmask 171008
        %v708 = vsel %vm707, %v706, %v700
        %vm709 = vcmask 293888
        %v710 = vsel %vm709, %v708, %v704
        %v711 = vld [vmem:[#allocation4 + $0x4e0] sm:$0xff]
        %v712 = vld [vmem:[#allocation4 + $0x4f0] sm:$0xff]
        %v713 = vld [vmem:[#allocation4 + $0x500] sm:$0xff]
        %v714 = vld [vmem:[#allocation4 + $0x510] sm:$0xff]
        %v715 = vld [vmem:[#allocation4 + $0x520] sm:$0xff]
        %v716 = vld [vmem:[#allocation4 + $0x530] sm:$0x1]
        %v717 = vld [vmem:[#allocation4 + $0x531] ss:$0 sm:$0xff]
        %vm718 = vcmask 334848
        %v720 = vsel %vm718, %v710, 0
        %v723 = vsel %vm240, %v716, 0
        %725 = vmatpush.msra.mxu0 0.0
        %726 = vmatpush.msra.mxu0 0.0
        %727 = vmatpush.msra.mxu0 0.0
        %728 = vmatpush.msra.mxu0 0.0
        %729 = vmatpush.msra.mxu0 0.0
        %730 = vmatpush.msra.mxu0 0.0
        %731 = vmatpush.msra.mxu0 0.0
        %732 = vmatpush.msra.mxu0 0.0
        %733 = vmatpush.msra.mxu0 0.0
        %734 = vmatpush.msra.mxu0 0.0
        %735 = vmatpush.msra.mxu0 %v723
        %736 = vmatpush.msra.mxu0 %v715
        %737 = vmatpush.msra.mxu0 %v714
        %738 = vmatpush.msra.mxu0 %v713
        %739 = vmatpush.msra.mxu0 %v712
        %740 = vmatpush.msra.mxu0 %v711
        %741 = vmatmul.f32.gmra.mxu0 %v720
        %v742 = vpop.f32.mrf.mxu0
        %v743 = vadd.f32 %v717, %v742
        %744 = vdwg.mxu0
        %v745 = vmax.f32 %v743, 0.0
        %v746 = vld [vmem:[#allocation4 + $0x540] sm:$0xff]
        %v747 = vld [vmem:[#allocation4 + $0x550] sm:$0xff]
        %v748 = vld [vmem:[#allocation4 + $0x560] sm:$0xf]
        %v749 = vld [vmem:[#allocation4 + $0x564] ss:$0 sm:$0xff]
        %vm750 = vcmask 162816
        %v752 = vsel %vm750, %v745, 0
        %vm754 = vcmask 1043456
        %v756 = vsel %vm754, %v748, 0
        %758 = vmatpush.msra.mxu0 0.0
        %759 = vmatpush.msra.mxu0 0.0
        %760 = vmatpush.msra.mxu0 0.0
        %761 = vmatpush.msra.mxu0 0.0
        %762 = vmatpush.msra.mxu0 0.0
        %763 = vmatpush.msra.mxu0 0.0
        %764 = vmatpush.msra.mxu0 0.0
        %765 = vmatpush.msra.mxu0 0.0
        %766 = vmatpush.msra.mxu0 0.0
        %767 = vmatpush.msra.mxu0 0.0
        %768 = vmatpush.msra.mxu0 0.0
        %769 = vmatpush.msra.mxu0 0.0
        %770 = vmatpush.msra.mxu0 0.0
        %771 = vmatpush.msra.mxu0 %v756
        %772 = vmatpush.msra.mxu0 %v747
        %773 = vmatpush.msra.mxu0 %v746
        %774 = vmatmul.f32.gmra.mxu0 %v752
        %v775 = vpop.f32.mrf.mxu0
        %v776 = vadd.f32 %v749, %v775
        %777 = vdwg.mxu0
        %v778 = vmax.f32 %v776, 0.0
        %v779 = vld [vmem:[#allocation4 + $0x570] sm:$0xff]
        %v780 = vld [vmem:[#allocation4 + $0x580] sm:$0x3]
        %v781 = vld [vmem:[#allocation4 + $0x582] ss:$0 sm:$0xff]
        %vm782 = vcmask 80896
        %v784 = vsel %vm782, %v778, 0
        %v787 = vsel %vm575, %v780, 0
        %789 = vmatpush.msra.mxu0 0.0
        %790 = vmatpush.msra.mxu0 0.0
        %791 = vmatpush.msra.mxu0 0.0
        %792 = vmatpush.msra.mxu0 0.0
        %793 = vmatpush.msra.mxu0 0.0
        %794 = vmatpush.msra.mxu0 0.0
        %795 = vmatpush.msra.mxu0 0.0
        %796 = vmatpush.msra.mxu0 0.0
        %797 = vmatpush.msra.mxu0 0.0
        %798 = vmatpush.msra.mxu0 0.0
        %799 = vmatpush.msra.mxu0 0.0
        %800 = vmatpush.msra.mxu0 0.0
        %801 = vmatpush.msra.mxu0 0.0
        %802 = vmatpush.msra.mxu0 0.0
        %803 = vmatpush.msra.mxu0 %v787
        %804 = vmatpush.msra.mxu0 %v779
        %805 = vmatmul.f32.gmra.mxu0 %v784
        %v806 = vpop.f32.mrf.mxu0
        %v807 = vadd.f32 %v781, %v806
        %808 = vdwg.mxu0
        %vm809 = vcmask 64512
        %810 = vst.msk [vmem:[%s178] sm:$0xff] %vm809, %v807
        %p811 = scmp.lt.s32.totalorder %s17, 1
        %s812 = scalar_select %p811, %s17, 1
        %s813 = smul.addr %s812, 8
        %s814 = scalar_lea.vmem %s2, %s813
        // Predicated region
        $region37: #{tpu_custom_call.1} parent=27 // pred_check
          %p815 = pneg %p82
        $region38: #{tpu_custom_call.1} parent=27 // pred_check_branch
          %817 = sbr.rel (%p815) target = $region40
        $region39: #{tpu_custom_call.1} parent=27 // pred_region
          _
        $region40: #{tpu_custom_call.1} parent=27 // pred_fallthru
          _
      $region28: #{tpu_custom_call.1} parent=5 // pred_fallthru
        _
      %p818 = scmp.le.s32.totalorder 2, %s12
      // Predicated region
      $region41: #{tpu_custom_call.1} parent=5 // pred_check
        %p819 = pneg %p818
      $region42: #{tpu_custom_call.1} parent=5 // pred_check_branch
        %821 = sbr.rel (%p819) target = $region44
      $region43: #{tpu_custom_call.1} parent=5 // pred_region
        %s822 = ssub.s32 %s12, 2
        // Predicated region
        $region45: #{tpu_custom_call.1} parent=43 // pred_check
          %p823 = pneg %p88
        $region46: #{tpu_custom_call.1} parent=43 // pred_check_branch
          %825 = sbr.rel (%p823) target = $region48
        $region47: #{tpu_custom_call.1} parent=43 // pred_region
          %p826 = scmp.lt.s32.totalorder %s18, 1
          %s827 = scalar_select %p826, %s18, 1
          %s828 = smul.addr %s827, 8
          %s829 = scalar_lea.vmem %s2, %s828
        $region48: #{tpu_custom_call.1} parent=43 // pred_fallthru
          _
      $region44: #{tpu_custom_call.1} parent=5 // pred_fallthru
        _
    $region6: #{tpu_custom_call.1} parent=1 // loop_footer
      %s16 = sadd.s32 1, %s12
    $region7: #{tpu_custom_call.1} parent=1 // loop_footer_branch
      %11 = sbr.rel target = $region3
    $region8: #{tpu_custom_call.1} parent=1 // loop_exit
      _
    %830 = vsyncpa [#allocation3], 1
    %s831 = scalar_lea.sflag [#allocation3], 1
    %832 = vsyncpa %s831, 1
    %833 = vsyncpa [#allocation5], 1

</llo_original>
